<compile_context>
chip_gen: v5e
topology: v5e:2x2
jax: 0.10.0
libtpu: 0.0.40
codegen_flags: <defaults>
</compile_context>

<pallas_src>
import functools

import jax
import jax.numpy as jnp
from jax.experimental import pallas as pl
from jax.experimental.pallas import tpu as pltpu


def _layernorm_kernel(x_ref, w_ref, o_ref, *, eps):
    # Hot path: mean / biased-variance reduction over the last (lane) axis + fused
    # affine. (x - mean) is recomputed in the output expression rather than kept
    # live across the variance reduction (one fewer (tr, D) f32 temp in VMEM).
    x = x_ref[...].astype(jnp.float32)                             # (tr, D)
    mean = jnp.mean(x, axis=-1, keepdims=True)                     # (tr, 1)
    var = jnp.mean(jnp.square(x - mean), axis=-1, keepdims=True)   # unbiased=False
    inv_std = jax.lax.rsqrt(var + eps)                             # EUP rsqrt
    scale = w_ref[0:1, :].astype(jnp.float32)                      # (1, D)
    shift = w_ref[1:2, :].astype(jnp.float32)                      # (1, D)
    o_ref[...] = ((x - mean) * (inv_std * scale) + shift).astype(o_ref.dtype)


def _round_up(n, m):
    return ((n + m - 1) // m) * m


def _vmem_capacity_bytes():
    try:
        return int(pltpu.get_tpu_info().vmem_capacity_bytes)
    except Exception:
        return 64 * 1024 * 1024   # v7x-safe fallback


def _pick_row_tile(R, D, in_itemsize, budget, sublane, bytes_per_row):
    """Budget-derived, sublane-aligned row tile with a megacore-friendly step count."""
    target = budget // max(bytes_per_row, 1)
    target = max(sublane, min(target, 1024))
    target = (target // sublane) * sublane
    # Prefer >= 8 grid steps (>= 4 per v7x TensorCore so prefetch/compute overlap),
    # but never let a step move < ~1 MiB of input (keeps ~0.35us/step overhead
    # amortized). Only kicks in when R is large enough.
    min_rows_per_step = _round_up(
        max(sublane, -(-(1024 * 1024) // max(D * in_itemsize, 1))), sublane)
    desired_steps = 8
    if R >= desired_steps * min_rows_per_step:
        per_step = _round_up(-(-R // desired_steps), sublane)
        target = min(target, max(per_step, min_rows_per_step))
    return max(sublane, target)


def layer_norm_pallas(x, weight, eps=1e-05, *, row_tile=None):
    """weight: (2, embed_dim) — row 0 = scale, row 1 = shift (as in the PyTorch module)."""
    orig_shape = x.shape
    D = orig_shape[-1]
    x2d = x.reshape(-1, D)
    R = x2d.shape[0]

    in_item = jnp.dtype(x.dtype).itemsize
    out_item = in_item
    sublane = max(8, 32 // in_item)                 # 8 f32, 16 bf16, 32 int8/fp8
    # Per-row VMEM bytes: double-buffered in + out tiles plus ~2 f32 intermediates.
    bytes_per_row = D * (2 * in_item + 2 * out_item + 2 * 4)

    capacity = _vmem_capacity_bytes()
    budget = min(capacity // 2, 64 * 1024 * 1024)   # 64 MiB on v5e/v6e, 32 MiB on v7x

    if row_tile is not None:
        # Validate / align a user-supplied tile: sublane-aligned, VMEM-budget clamped.
        tr = _round_up(max(int(row_tile), sublane), sublane)
        max_tr = max(sublane,
                     ((budget // max(bytes_per_row, 1)) // sublane) * sublane)
        tr = min(tr, max_tr)
    else:
        tr = _pick_row_tile(R, D, in_item, budget, sublane, bytes_per_row)

    # Never make the tile larger than the (sublane-rounded) row count.
    tr = min(tr, _round_up(max(R, 1), sublane))

    grid = (pl.cdiv(R, tr),)                        # ragged tail handled by Pallas

    w = jnp.asarray(weight).reshape(2, D)

    # Explicit scoped-VMEM limit sized from the tiles (with margin), generation-capped.
    vmem_need = (2 * tr * D * in_item               # double-buffered input tile
                 + 2 * tr * D * out_item            # double-buffered output tile
                 + 2 * 2 * D * 4                    # resident weights
                 + 2 * tr * D * 4)                  # f32 intermediates
    vmem_limit = int(min(capacity * 3 // 4,
                         max(vmem_need * 3 // 2, 16 * 1024 * 1024)))

    kernel = functools.partial(_layernorm_kernel, eps=eps)

    out = pl.pallas_call(
        kernel,
        out_shape=jax.ShapeDtypeStruct((R, D), x.dtype),
        grid_spec=pltpu.PrefetchScalarGridSpec(
            num_scalar_prefetch=0,
            grid=grid,
            in_specs=[
                pl.BlockSpec((tr, D), lambda i: (i, 0)),   # x rows tile
                pl.BlockSpec((2, D), lambda i: (0, 0)),    # weights, resident
            ],
            out_specs=pl.BlockSpec((tr, D), lambda i: (i, 0)),
        ),
        compiler_params=pltpu.CompilerParams(
            dimension_semantics=("parallel",),
            vmem_limit_bytes=vmem_limit,
        ),
    )(x2d, w)

    return out.reshape(orig_shape)


def layer_norm_ref(x, weight, eps=1e-05):
    xf = x.astype(jnp.float32)
    mean = jnp.mean(xf, axis=-1, keepdims=True)
    var = jnp.mean((xf - mean) ** 2, axis=-1, keepdims=True)
    norm = (xf - mean) / jnp.sqrt(var + eps)
    return (norm * weight[0] + weight[1]).astype(x.dtype)


if __name__ == "__main__":
    key = jax.random.PRNGKey(0)
    batch, seq, embed_dim = 2, 8, 32

    kx, kw, kx2 = jax.random.split(key, 3)
    x = jax.random.normal(kx, (batch, seq, embed_dim), dtype=jnp.float32)

    # Deterministic parameter init, matching the module's __init__:
    # weight = stack([ones(embed_dim), zeros(embed_dim)]) -> shape (2, embed_dim)
    weight = jnp.stack([jnp.ones((embed_dim,), jnp.float32),
                        jnp.zeros((embed_dim,), jnp.float32)], axis=0)

    out = jax.block_until_ready(layer_norm_pallas(x, weight, eps=1e-05))
    ref = layer_norm_ref(x, weight, eps=1e-05)
    assert out.shape == x.shape and out.dtype == x.dtype
    assert jnp.allclose(out, ref, atol=1e-5, rtol=1e-5)

    # Exercise the affine path with non-trivial scale/shift.
    weight2 = jax.random.normal(kw, (2, embed_dim), dtype=jnp.float32)
    out2 = jax.block_until_ready(layer_norm_pallas(x, weight2, eps=1e-05))
    ref2 = layer_norm_ref(x, weight2, eps=1e-05)
    assert jnp.allclose(out2, ref2, atol=1e-5, rtol=1e-5)

    # Exercise the no-pad ragged-tail path: R=21 rows with an explicit 8-row tile
    # -> grid of 3 steps, last block has 5 valid rows (masked store).
    x3 = jax.random.normal(kx2, (3, 7, embed_dim), dtype=jnp.float32)
    out3 = jax.block_until_ready(layer_norm_pallas(x3, weight2, eps=1e-05, row_tile=8))
    ref3 = layer_norm_ref(x3, weight2, eps=1e-05)
    assert out3.shape == x3.shape
    assert jnp.allclose(out3, ref3, atol=1e-5, rtol=1e-5)

    print("KERNEL_OK")
</pallas_src>

<mosaic_0001>
module attributes {stable_mosaic.version = 11 : i64} {
  func.func @_layernorm_kernel(%arg0: i32, %arg1: memref<16x32xf32, #tpu.memory_space<vmem>>, %arg2: memref<2x32xf32, #tpu.memory_space<vmem>>, %arg3: memref<16x32xf32, #tpu.memory_space<vmem>>) attributes {dimension_semantics = [#tpu.dimension_semantics<parallel>], iteration_bounds = array<i64: 1>, scalar_prefetch = 0 : i64, scratch_operands = 0 : i64, tpu.core_type = #tpu.core_type<tc>, window_params = [{transform_indices = @transform_0, window_bounds = array<i64: 16, 32>}, {pipeline_mode = #tpu.pipeline_mode<synchronous>, transform_indices = @transform_1, window_bounds = array<i64: 2, 32>}, {transform_indices = @transform_2, window_bounds = array<i64: 16, 32>}]} {
    %c0 = arith.constant 0 : index
    %c0_0 = arith.constant 0 : index
    %0 = vector.load %arg1[%c0, %c0_0] : memref<16x32xf32, #tpu.memory_space<vmem>>, vector<16x32xf32>
    %cst = arith.constant dense<0.000000e+00> : vector<16xf32>
    %1 = vector.multi_reduction <add>, %0, %cst [1] : vector<16x32xf32> to vector<16xf32>
    %2 = vector.shape_cast %1 : vector<16xf32> to vector<16x1xf32>
    %cst_1 = arith.constant 3.200000e+01 : f32
    %3 = vector.broadcast %cst_1 : f32 to vector<16x1xf32>
    %4 = arith.divf %2, %3 : vector<16x1xf32>
    %5 = vector.broadcast %4 : vector<16x1xf32> to vector<16x32xf32>
    %6 = arith.subf %0, %5 : vector<16x32xf32>
    %7 = arith.mulf %6, %6 : vector<16x32xf32>
    %cst_2 = arith.constant dense<0.000000e+00> : vector<16xf32>
    %8 = vector.multi_reduction <add>, %7, %cst_2 [1] : vector<16x32xf32> to vector<16xf32>
    %9 = vector.shape_cast %8 : vector<16xf32> to vector<16x1xf32>
    %cst_3 = arith.constant 3.200000e+01 : f32
    %10 = vector.broadcast %cst_3 : f32 to vector<16x1xf32>
    %11 = arith.divf %9, %10 : vector<16x1xf32>
    %cst_4 = arith.constant 9.99999974E-6 : f32
    %12 = vector.broadcast %cst_4 : f32 to vector<16x1xf32>
    %13 = arith.addf %11, %12 : vector<16x1xf32>
    %14 = math.rsqrt %13 : vector<16x1xf32>
    %c0_5 = arith.constant 0 : index
    %c0_6 = arith.constant 0 : index
    %15 = vector.load %arg2[%c0_5, %c0_6] : memref<2x32xf32, #tpu.memory_space<vmem>>, vector<1x32xf32>
    %c1 = arith.constant 1 : index
    %c0_7 = arith.constant 0 : index
    %16 = vector.load %arg2[%c1, %c0_7] : memref<2x32xf32, #tpu.memory_space<vmem>>, vector<1x32xf32>
    %17 = vector.broadcast %4 : vector<16x1xf32> to vector<16x32xf32>
    %18 = arith.subf %0, %17 : vector<16x32xf32>
    %19 = vector.broadcast %14 : vector<16x1xf32> to vector<16x32xf32>
    %20 = vector.broadcast %15 : vector<1x32xf32> to vector<16x32xf32>
    %21 = arith.mulf %19, %20 : vector<16x32xf32>
    %22 = arith.mulf %18, %21 : vector<16x32xf32>
    %23 = vector.broadcast %16 : vector<1x32xf32> to vector<16x32xf32>
    %24 = arith.addf %22, %23 : vector<16x32xf32>
    %c0_8 = arith.constant 0 : index
    %c0_9 = arith.constant 0 : index
    %25 = vector.load %arg3[%c0_8, %c0_9] : memref<16x32xf32, #tpu.memory_space<vmem>>, vector<16x32xf32>
    tpu.vector_store %arg3[%c0_8, %c0_9], %24 {strides = array<i32>} : memref<16x32xf32, #tpu.memory_space<vmem>>, vector<16x32xf32>,
    return
  }
  func.func @transform_0(%arg0: i32) -> (i32, i32) {
    %c0_i32 = arith.constant 0 : i32
    %c0_i32_0 = arith.constant 0 : i32
    return %arg0, %c0_i32 : i32, i32
  }
  func.func @transform_1(%arg0: i32) -> (i32, i32) {
    %c0_i32 = arith.constant 0 : i32
    %c0_i32_0 = arith.constant 0 : i32
    %c0_i32_1 = arith.constant 0 : i32
    return %c0_i32, %c0_i32_0 : i32, i32
  }
  func.func @transform_2(%arg0: i32) -> (i32, i32) {
    %c0_i32 = arith.constant 0 : i32
    %c0_i32_0 = arith.constant 0 : i32
    return %arg0, %c0_i32 : i32, i32
  }
}

</mosaic_0001>

<llo_original>
// kernel: tpu_custom_call.1
$region0: #{tpu_custom_call.1}
  #allocation0 [shape = 'u32[]', space=smem, size = 0x4, offset = 0x4, fixed_abs, tag = 'smem constant byte address 0x4 - core index']
  #allocation1 [shape = 'u32[72,128]{1,0:T(1,128)}', space=vmem, size = 0x9000, scoped, tag = 'internal scratch']
  %s0 = inlined_call_operand.hbm [shape: f32[16,32], index: 0, kind: input, shape index: {}]
  %s1 = inlined_call_operand.hbm [shape: f32[2,32], index: 1, kind: input, shape index: {}]
  %s2 = inlined_call_operand.hbm [shape: f32[16,32], index: 2, kind: output, shape index: {}]
  %s3 = sld [smem:[#allocation0]]
  $region26: #{tpu_custom_call.1} parent=0
    _
  %s5 = ssub.s32 1, %s3
  %s6 = scalar_select 0, %s5, %s3
  $region1: #{tpu_custom_call.1} parent=0
    #allocation2 [shape = 'u8[8192]{0}', space=vmem, size = 0x2000, scoped, tag = 'input window, operand 0, single buffered']
    #allocation3 [shape = 's32[1]{0}', space=sflag, size = 0x4, scoped, tag = 'scoped memory for tpu_custom_call.1']
    #allocation4 [shape = 's32[1]{0}', space=sflag, size = 0x4, scoped, tag = 'scoped memory for tpu_custom_call.1']
    #allocation5 [shape = 'u8[1024]{0}', space=vmem, size = 0x400, scoped, tag = 'input window, operand 1, single buffered']
    #allocation6 [shape = 's32[1]{0}', space=sflag, size = 0x4, scoped, tag = 'scoped memory for tpu_custom_call.1']
    #allocation7 [shape = 'u8[8192]{0}', space=vmem, size = 0x2000, scoped, tag = 'output window, operand 0, single buffered']
    %7 = vsyncpa [#allocation3], 0
    %8 = vsyncpa [#allocation6], 0
    %9 = vsyncpa [#allocation4], 0
    // Predicated region
    $region2: #{tpu_custom_call.1} parent=1 // pred_check
      _
    $region3: #{tpu_custom_call.1} parent=1 // pred_check_branch
      %11 = sbr.rel (0) target = $region5
    $region4: #{tpu_custom_call.1} parent=1 // pred_region
      %13 = vsyncadd [#allocation3], 0
      %s14 = sshll.u32 %s0, 4
      %s15 = int_to_ptr.hbm [resolvable:$true] %s14
      %s16 = sshll.u32 [#allocation2], 4
      %s17 = int_to_ptr.vmem [resolvable:$true] %s16
      %22 = dma.hbm_to_vmem [thread:$0]  %s15, 256, %s17, [#allocation3], 128, 128, 8
    $region5: #{tpu_custom_call.1} parent=1 // pred_fallthru
      _
    // Predicated region
    $region6: #{tpu_custom_call.1} parent=1 // pred_check
      _
    $region7: #{tpu_custom_call.1} parent=1 // pred_check_branch
      %24 = sbr.rel (0) target = $region9
    $region8: #{tpu_custom_call.1} parent=1 // pred_region
      %26 = vsyncadd [#allocation6], 0
      %s28 = sshll.u32 %s1, 4
      %s29 = int_to_ptr.hbm [resolvable:$true] %s28
      %s30 = sshll.u32 [#allocation5], 4
      %s31 = int_to_ptr.vmem [resolvable:$true] %s30
      %33 = dma.hbm_to_vmem [thread:$0]  %s29, 32, %s31, [#allocation6]
    $region9: #{tpu_custom_call.1} parent=1 // pred_fallthru
      _
    // Predicated region
    $region10: #{tpu_custom_call.1} parent=1 // pred_check
      _
    $region11: #{tpu_custom_call.1} parent=1 // pred_check_branch
      %35 = sbr.rel (0) target = $region13
    $region12: #{tpu_custom_call.1} parent=1 // pred_region
      %37 = dma.done [#allocation3], 256
    $region13: #{tpu_custom_call.1} parent=1 // pred_fallthru
      _
    // Predicated region
    $region14: #{tpu_custom_call.1} parent=1 // pred_check
      _
    $region15: #{tpu_custom_call.1} parent=1 // pred_check_branch
      %39 = sbr.rel (0) target = $region17
    $region16: #{tpu_custom_call.1} parent=1 // pred_region
      %41 = dma.done [#allocation6], 32
    $region17: #{tpu_custom_call.1} parent=1 // pred_fallthru
      _
    %v42 = vld [vmem:[#allocation2] sm:$0xff]
    %v43 = vld [vmem:[#allocation2 + $0x8] sm:$0xff]
    %vm44 = vcmask 261120
    %v45 = vsel %vm44, %v42, 0.0
    %46 = vadd.xlane.f32.xlu0 %v45
    %v47 = vpop.xlane.xlu0 %46
    %v48 = vsel %vm44, %v43, 0.0
    %49 = vadd.xlane.f32.xlu0 %v48
    %v50 = vpop.xlane.xlu0 %49
    %v51 = vrcp.pop 32.0
    %v52 = vmul.f32 32.0, %v51
    %v53 = vsub.f32 1.0, %v52
    %v54 = vmul.f32 %v51, %v53
    %v55 = vadd.f32 %v51, %v54
    %vm56 = vweird.f32 %v51
    %v57 = vsel %vm56, %v51, %v55
    %v58 = vmul.f32 %v47, %v57
    %v59 = vmul.f32 %v50, %v57
    %v60 = vsub.f32 %v42, %v58
    %v61 = vsub.f32 %v43, %v59
    %v62 = vmul.f32 %v60, %v60
    %v63 = vmul.f32 %v61, %v61
    %v64 = vsel %vm44, %v62, 0.0
    %65 = vadd.xlane.f32.xlu0 %v64
    %v66 = vpop.xlane.xlu0 %65
    %v67 = vsel %vm44, %v63, 0.0
    %68 = vadd.xlane.f32.xlu0 %v67
    %v69 = vpop.xlane.xlu0 %68
    %v70 = vmul.f32 %v66, %v57
    %v71 = vmul.f32 %v69, %v57
    %v72 = vadd.f32 %v70, 1e-05
    %v73 = vadd.f32 %v71, 1e-05
    %v74 = vrsqrt.pop %v72
    %v75 = vmul.f32 %v74, %v72
    %v76 = vmul.f32 %v75, %v74
    %v77 = vmul.f32 0.5, %v76
    %v78 = vsub.f32 1.5, %v77
    %v79 = vmul.f32 %v74, %v78
    %vm80 = vweird.f32 %v72
    %vm81 = vweird.f32 %v74
    %vm82 = vmor %vm80, %vm81
    %v83 = vsel %vm82, %v74, %v79
    %v84 = vrsqrt.pop %v73
    %v85 = vmul.f32 %v84, %v73
    %v86 = vmul.f32 %v85, %v84
    %v87 = vmul.f32 0.5, %v86
    %v88 = vsub.f32 1.5, %v87
    %v89 = vmul.f32 %v84, %v88
    %vm90 = vweird.f32 %v73
    %vm91 = vweird.f32 %v84
    %vm92 = vmor %vm90, %vm91
    %v93 = vsel %vm92, %v84, %v89
    %v94 = vld [vmem:[#allocation5] sm:$0x1]
    %v95 = vld [vmem:[#allocation5 + $0x1] sm:$0x1]
    %v96 = vperm.slane %v94, 0
    %v97 = vmul.f32 %v83, %v96
    %v98 = vmul.f32 %v93, %v96
    %v99 = vmul.f32 %v60, %v97
    %v100 = vmul.f32 %v61, %v98
    %v101 = vperm.slane %v95, 0
    %v102 = vadd.f32 %v99, %v101
    %v103 = vadd.f32 %v100, %v101
    %104 = vst.msk [vmem:[#allocation7] sm:$0xff] %vm44, %v102
    %105 = vst.msk [vmem:[#allocation7 + $0x8] sm:$0xff] %vm44, %v103
    // Predicated region
    $region18: #{tpu_custom_call.1} parent=1 // pred_check
      _
    $region19: #{tpu_custom_call.1} parent=1 // pred_check_branch
      %107 = sbr.rel (0) target = $region21
    $region20: #{tpu_custom_call.1} parent=1 // pred_region
      %109 = vsyncadd [#allocation4], 0
      %s110 = sshll.u32 [#allocation7], 4
      %s111 = int_to_ptr.vmem [resolvable:$true] %s110
      %s112 = sshll.u32 %s2, 4
      %s113 = int_to_ptr.hbm [resolvable:$true] %s112
      %118 = dma.vmem_to_hbm [thread:$0]  %s111, 256, %s113, [#allocation4], 128, 128, 8
    $region21: #{tpu_custom_call.1} parent=1 // pred_fallthru
      _
    // Predicated region
    $region22: #{tpu_custom_call.1} parent=1 // pred_check
      _
    $region23: #{tpu_custom_call.1} parent=1 // pred_check_branch
      %120 = sbr.rel (0) target = $region25
    $region24: #{tpu_custom_call.1} parent=1 // pred_region
      %122 = dma.done [#allocation4], 256
    $region25: #{tpu_custom_call.1} parent=1 // pred_fallthru
      _
    %123 = vsyncpa [#allocation3], 1
    %124 = vsyncpa [#allocation6], 1
    %125 = vsyncpa [#allocation4], 1

</llo_original>
